<compile_context>
chip_gen: v7x
topology: tpu7x:2x2x1
jax: 0.10.0
libtpu: 0.0.40
codegen_flags: <defaults>
</compile_context>

<pallas_src>
import jax
import jax.numpy as jnp
from jax.experimental import pallas as pl
from jax.experimental.pallas import tpu as pltpu


def _mgu_kernel(x_ref, h_ref, wih_ref, bih_ref, whh_ref, o_ref):
    """Fused ConvMGU cell (kernel=1) for one (batch, pixel-tile) grid step.

    Layout: channels on sublanes, pixels on lanes (lane-dense output).
      x_ref  : (C_in,    tp)    input pixels
      h_ref  : (C_hid,   tp)    hidden-state pixels
      wih_ref: (2*C_hid, C_in)  conv_ih 1x1 weight
      bih_ref: (2*C_hid, 1)     conv_ih bias (column, broadcast over lanes)
      whh_ref: (2*C_hid, C_hid) conv_hh 1x1 weight (no bias)
      o_ref  : (C_hid,   tp)    new hidden state
    """
    hid = o_ref.shape[0]

    # 1x1 conv == channel matmul; result (2*C_hid, tp) is lane-dense.
    gi = jnp.dot(wih_ref[...], x_ref[...],
                 preferred_element_type=jnp.float32) + bih_ref[...]
    gh = jnp.dot(whh_ref[...], h_ref[...],
                 preferred_element_type=jnp.float32)

    # torch.chunk(2, dim=1) == sublane slice at row C_hid (multiple of 8): cheap.
    f_i, c_i = gi[:hid, :], gi[hid:, :]
    f_h, c_h = gh[:hid, :], gh[hid:, :]

    forget = jax.nn.sigmoid(f_i + f_h)          # EUP
    candidate = jnp.tanh(forget * c_h + c_i)    # EUP
    h = h_ref[...].astype(jnp.float32)
    hy = candidate + forget * (h - candidate)

    o_ref[...] = hy.astype(o_ref.dtype)


def _round_up(a, b):
    return ((a + b - 1) // b) * b


def conv_mgu_forward(x_nchw, h_nchw, w_ih, b_ih, w_hh, *, tile_pix=2048):
    """ConvMGU forward (kernel=1, dilation=1).

    x_nchw: (N, C_in, H, W)    h_nchw: (N, C_hid, H, W)
    w_ih:   (2*C_hid, C_in, 1, 1)    b_ih: (2*C_hid,)
    w_hh:   (2*C_hid, C_hid, 1, 1)
    returns new hidden state (N, C_hid, H, W)
    """
    N, C_in, H, W = x_nchw.shape
    C_hid = h_nchw.shape[1]
    HW = H * W

    # NCHW -> (N, C, H*W): contiguous reshape (free). Channels land on
    # sublanes, pixels on lanes -- no transposes in or out.
    x3d = x_nchw.reshape(N, C_in, HW)
    h3d = h_nchw.reshape(N, C_hid, HW)

    # 1x1 conv weights used in their native (out_ch, in_ch) orientation.
    wih_mat = w_ih[:, :, 0, 0]                 # (2H, C_in)
    whh_mat = w_hh[:, :, 0, 0]                 # (2H, C_hid)
    bih_col = b_ih.reshape(2 * C_hid, 1)       # (2H, 1)

    # Pixel (lane) tile: multiple of 128, as large as fits the image (up to
    # tile_pix). VMEM per step ~= 2 bufs * tp * (C_in + 2*C_hid) * 4B, tiny at
    # these channel counts on every generation.
    tp = min(tile_pix, _round_up(HW, 128))
    tp = _round_up(tp, 128)
    HW_pad = _round_up(HW, tp)
    if HW_pad != HW:
        x3d = jnp.pad(x3d, ((0, 0), (0, 0), (0, HW_pad - HW)))
        h3d = jnp.pad(h3d, ((0, 0), (0, 0), (0, HW_pad - HW)))

    grid = (N, HW_pad // tp)

    out3d = pl.pallas_call(
        _mgu_kernel,
        out_shape=jax.ShapeDtypeStruct((N, C_hid, HW_pad), h_nchw.dtype),
        grid_spec=pltpu.PrefetchScalarGridSpec(
            num_scalar_prefetch=0,
            grid=grid,
            in_specs=[
                # batch dim squeezed out of the kernel view
                pl.BlockSpec((None, C_in, tp), lambda n, i: (n, 0, i)),   # x
                pl.BlockSpec((None, C_hid, tp), lambda n, i: (n, 0, i)),  # h
                pl.BlockSpec((2 * C_hid, C_in), lambda n, i: (0, 0)),     # W_ih
                pl.BlockSpec((2 * C_hid, 1), lambda n, i: (0, 0)),        # b_ih
                pl.BlockSpec((2 * C_hid, C_hid), lambda n, i: (0, 0)),    # W_hh
            ],
            out_specs=pl.BlockSpec((None, C_hid, tp), lambda n, i: (n, 0, i)),
        ),
        compiler_params=pltpu.CompilerParams(
            dimension_semantics=("parallel", "parallel")),
    )(x3d, h3d, wih_mat, bih_col, whh_mat)

    out3d = out3d[:, :, :HW]                   # drop lane padding (no-op if exact)
    return out3d.reshape(N, C_hid, H, W)       # already NCHW layout


def _reference_forward(x, h, w_ih, b_ih, w_hh):
    """Plain-JAX reference matching the PyTorch forward (kernel=1)."""
    C_hid = h.shape[1]
    gi = jnp.einsum('nchw,oc->nohw', x, w_ih[:, :, 0, 0]) + b_ih[None, :, None, None]
    gh = jnp.einsum('nchw,oc->nohw', h, w_hh[:, :, 0, 0])
    f_i, c_i = gi[:, :C_hid], gi[:, C_hid:]
    f_h, c_h = gh[:, :C_hid], gh[:, C_hid:]
    forget = jax.nn.sigmoid(f_i + f_h)
    candidate = jnp.tanh(forget * c_h + c_i)
    return candidate + forget * (h - candidate)


def _xavier_uniform(key, shape, gain=1.0):
    # shape = (out_ch, in_ch, kh, kw)
    fan_in = shape[1] * shape[2] * shape[3]
    fan_out = shape[0] * shape[2] * shape[3]
    bound = gain * jnp.sqrt(6.0 / (fan_in + fan_out))
    return jax.random.uniform(key, shape, jnp.float32, -bound, bound)


if __name__ == "__main__":
    # Small shapes consistent with the module: NCHW input + hidden state.
    N, C_in, C_hid, H, W = 2, 4, 32, 16, 16

    key = jax.random.PRNGKey(0)
    k_x, k_h, k_wih, k_bih, k_whh = jax.random.split(key, 5)

    x = jax.random.normal(k_x, (N, C_in, H, W), jnp.float32)
    h0 = jax.random.normal(k_h, (N, C_hid, H, W), jnp.float32)

    # Parameter init mirroring the module's __init__ (kernel=1):
    #   conv_ih: Conv2d(C_in, 2*C_hid, 1, bias=True), xavier_uniform_(gain=relu)
    #   conv_hh: Conv2d(C_hid, 2*C_hid, 1, bias=False), xavier_uniform_
    relu_gain = jnp.sqrt(2.0)
    w_ih = _xavier_uniform(k_wih, (2 * C_hid, C_in, 1, 1), gain=relu_gain)
    b_bound = 1.0 / jnp.sqrt(C_in)
    b_ih = jax.random.uniform(k_bih, (2 * C_hid,), jnp.float32, -b_bound, b_bound)
    w_hh = _xavier_uniform(k_whh, (2 * C_hid, C_hid, 1, 1), gain=1.0)

    hy = conv_mgu_forward(x, h0, w_ih, b_ih, w_hh)
    hy = jax.block_until_ready(hy)

    ref = _reference_forward(x, h0, w_ih, b_ih, w_hh)
    assert hy.shape == (N, C_hid, H, W)
    assert jnp.allclose(hy, ref, atol=1e-5, rtol=1e-5)

    print("KERNEL_OK")
</pallas_src>

<mosaic_0001>
module attributes {stable_mosaic.version = 11 : i64} {
  func.func @_mgu_kernel(%arg0: i32, %arg1: i32, %arg2: memref<1x4x256xf32, #tpu.memory_space<vmem>>, %arg3: memref<1x32x256xf32, #tpu.memory_space<vmem>>, %arg4: memref<64x4xf32, #tpu.memory_space<vmem>>, %arg5: memref<64x1xf32, #tpu.memory_space<vmem>>, %arg6: memref<64x32xf32, #tpu.memory_space<vmem>>, %arg7: memref<1x32x256xf32, #tpu.memory_space<vmem>>) attributes {dimension_semantics = [#tpu.dimension_semantics<parallel>, #tpu.dimension_semantics<parallel>], iteration_bounds = array<i64: 2, 1>, scalar_prefetch = 0 : i64, scratch_operands = 0 : i64, tpu.core_type = #tpu.core_type<tc>, window_params = [{transform_indices = @transform_0, window_bounds = array<i64: 1, 4, 256>}, {transform_indices = @transform_1, window_bounds = array<i64: 1, 32, 256>}, {pipeline_mode = #tpu.pipeline_mode<synchronous>, transform_indices = @transform_2, window_bounds = array<i64: 64, 4>}, {pipeline_mode = #tpu.pipeline_mode<synchronous>, transform_indices = @transform_3, window_bounds = array<i64: 64, 1>}, {pipeline_mode = #tpu.pipeline_mode<synchronous>, transform_indices = @transform_4, window_bounds = array<i64: 64, 32>}, {transform_indices = @transform_5, window_bounds = array<i64: 1, 32, 256>}]} {
    %c0 = arith.constant 0 : index
    %c0_0 = arith.constant 0 : index
    %0 = vector.load %arg4[%c0, %c0_0] : memref<64x4xf32, #tpu.memory_space<vmem>>, vector<64x4xf32>
    %c0_1 = arith.constant 0 : index
    %c0_2 = arith.constant 0 : index
    %c0_3 = arith.constant 0 : index
    %1 = vector.load %arg2[%c0_1, %c0_2, %c0_3] : memref<1x4x256xf32, #tpu.memory_space<vmem>>, vector<1x4x256xf32>
    %2 = vector.shape_cast %1 : vector<1x4x256xf32> to vector<4x256xf32>
    %cst = arith.constant dense<0.000000e+00> : vector<64x256xf32>
    %3 = tpu.matmul %0, %2, %cst {dimension_numbers = #tpu.dot_dimension_numbers<[1], [0], [0], [1], [0, 0, 1, 1], [], []>} : vector<64x4xf32>, vector<4x256xf32>, vector<64x256xf32> -> vector<64x256xf32>
    %c0_4 = arith.constant 0 : index
    %c0_5 = arith.constant 0 : index
    %4 = vector.load %arg5[%c0_4, %c0_5] : memref<64x1xf32, #tpu.memory_space<vmem>>, vector<64x1xf32>
    %5 = vector.broadcast %4 : vector<64x1xf32> to vector<64x256xf32>
    %6 = arith.addf %3, %5 : vector<64x256xf32>
    %c0_6 = arith.constant 0 : index
    %c0_7 = arith.constant 0 : index
    %7 = vector.load %arg6[%c0_6, %c0_7] : memref<64x32xf32, #tpu.memory_space<vmem>>, vector<64x32xf32>
    %c0_8 = arith.constant 0 : index
    %c0_9 = arith.constant 0 : index
    %c0_10 = arith.constant 0 : index
    %8 = vector.load %arg3[%c0_8, %c0_9, %c0_10] : memref<1x32x256xf32, #tpu.memory_space<vmem>>, vector<1x32x256xf32>
    %9 = vector.shape_cast %8 : vector<1x32x256xf32> to vector<32x256xf32>
    %cst_11 = arith.constant dense<0.000000e+00> : vector<64x256xf32>
    %10 = tpu.matmul %7, %9, %cst_11 {dimension_numbers = #tpu.dot_dimension_numbers<[1], [0], [0], [1], [0, 0, 1, 1], [], []>} : vector<64x32xf32>, vector<32x256xf32>, vector<64x256xf32> -> vector<64x256xf32>
    %11 = vector.extract_strided_slice %6 {offsets = [0, 0], sizes = [32, 256], strides = [1, 1]} : vector<64x256xf32> to vector<32x256xf32>
    %12 = vector.extract_strided_slice %6 {offsets = [32, 0], sizes = [32, 256], strides = [1, 1]} : vector<64x256xf32> to vector<32x256xf32>
    %13 = vector.extract_strided_slice %10 {offsets = [0, 0], sizes = [32, 256], strides = [1, 1]} : vector<64x256xf32> to vector<32x256xf32>
    %14 = vector.extract_strided_slice %10 {offsets = [32, 0], sizes = [32, 256], strides = [1, 1]} : vector<64x256xf32> to vector<32x256xf32>
    %15 = arith.addf %11, %13 : vector<32x256xf32>
    %16 = arith.negf %15 : vector<32x256xf32>
    %17 = math.exp %16 : vector<32x256xf32>
    %cst_12 = arith.constant 1.000000e+00 : f32
    %18 = vector.broadcast %cst_12 : f32 to vector<32x256xf32>
    %19 = arith.addf %18, %17 : vector<32x256xf32>
    %20 = arith.divf %18, %19 : vector<32x256xf32>
    %21 = arith.mulf %20, %14 : vector<32x256xf32>
    %22 = arith.addf %21, %12 : vector<32x256xf32>
    %23 = math.tanh %22 : vector<32x256xf32>
    %c0_13 = arith.constant 0 : index
    %c0_14 = arith.constant 0 : index
    %c0_15 = arith.constant 0 : index
    %24 = vector.load %arg3[%c0_13, %c0_14, %c0_15] : memref<1x32x256xf32, #tpu.memory_space<vmem>>, vector<1x32x256xf32>
    %25 = vector.shape_cast %24 : vector<1x32x256xf32> to vector<32x256xf32>
    %26 = arith.subf %25, %23 : vector<32x256xf32>
    %27 = arith.mulf %20, %26 : vector<32x256xf32>
    %28 = arith.addf %23, %27 : vector<32x256xf32>
    %c0_16 = arith.constant 0 : index
    %c0_17 = arith.constant 0 : index
    %c0_18 = arith.constant 0 : index
    %29 = vector.load %arg7[%c0_16, %c0_17, %c0_18] : memref<1x32x256xf32, #tpu.memory_space<vmem>>, vector<1x32x256xf32>
    %30 = vector.shape_cast %29 : vector<1x32x256xf32> to vector<32x256xf32>
    %31 = vector.shape_cast %28 : vector<32x256xf32> to vector<1x32x256xf32>
    tpu.vector_store %arg7[%c0_16, %c0_17, %c0_18], %31 {strides = array<i32>} : memref<1x32x256xf32, #tpu.memory_space<vmem>>, vector<1x32x256xf32>,
    return
  }
  func.func @transform_0(%arg0: i32, %arg1: i32) -> (i32, i32, i32) {
    %c0_i32 = arith.constant 0 : i32
    %c0_i32_0 = arith.constant 0 : i32
    return %arg0, %c0_i32, %arg1 : i32, i32, i32
  }
  func.func @transform_1(%arg0: i32, %arg1: i32) -> (i32, i32, i32) {
    %c0_i32 = arith.constant 0 : i32
    %c0_i32_0 = arith.constant 0 : i32
    return %arg0, %c0_i32, %arg1 : i32, i32, i32
  }
  func.func @transform_2(%arg0: i32, %arg1: i32) -> (i32, i32) {
    %c0_i32 = arith.constant 0 : i32
    %c0_i32_0 = arith.constant 0 : i32
    %c0_i32_1 = arith.constant 0 : i32
    return %c0_i32, %c0_i32_0 : i32, i32
  }
  func.func @transform_3(%arg0: i32, %arg1: i32) -> (i32, i32) {
    %c0_i32 = arith.constant 0 : i32
    %c0_i32_0 = arith.constant 0 : i32
    %c0_i32_1 = arith.constant 0 : i32
    return %c0_i32, %c0_i32_0 : i32, i32
  }
  func.func @transform_4(%arg0: i32, %arg1: i32) -> (i32, i32) {
    %c0_i32 = arith.constant 0 : i32
    %c0_i32_0 = arith.constant 0 : i32
    %c0_i32_1 = arith.constant 0 : i32
    return %c0_i32, %c0_i32_0 : i32, i32
  }
  func.func @transform_5(%arg0: i32, %arg1: i32) -> (i32, i32, i32) {
    %c0_i32 = arith.constant 0 : i32
    %c0_i32_0 = arith.constant 0 : i32
    return %arg0, %c0_i32, %arg1 : i32, i32, i32
  }
}

</mosaic_0001>

<llo_original>
// kernel: tpu_custom_call.1
$region0: #{tpu_custom_call.1}
  #allocation0 [shape = 'u32[]', space=smem, size = 0x4, offset = 0x4, fixed_abs, tag = 'smem constant byte address 0x4 - core index']
  #allocation1 [shape = 'u32[144,128]{1,0:T(1,128)}', space=vmem, size = 0x12000, scoped, tag = 'internal scratch']
  %s0 = inlined_call_operand.vmem [shape: f32[2,4,256], index: 0, kind: input, shape index: {}]
  %s1 = inlined_call_operand.vmem [shape: f32[2,32,256], index: 1, kind: input, shape index: {}]
  %s2 = inlined_call_operand.vmem [shape: f32[64,4], index: 2, kind: input, shape index: {}]
  %s3 = inlined_call_operand.vmem [shape: f32[64,1], index: 3, kind: input, shape index: {}]
  %s4 = inlined_call_operand.vmem [shape: f32[64,32], index: 4, kind: input, shape index: {}]
  %s5 = inlined_call_operand.hbm [shape: f32[2,32,256], index: 5, kind: output, shape index: {}]
  %s6 = sld [smem:[#allocation0]]
  $region53: #{tpu_custom_call.1} parent=0
    _
  %s8 = ssub.s32 1, %s6
  %s9 = scalar_select 0, %s8, %s6
  $region1: #{tpu_custom_call.1} parent=0
    #allocation2 [shape = 'u8[65536]{0}', space=vmem, size = 0x10000, scoped, tag = 'output window, operand 0']
    #allocation3 [shape = 's32[2]{0}', space=sflag, size = 0x8, scoped, tag = 'scoped memory for tpu_custom_call.1']
    %10 = vsyncpa [#allocation3], 0
    %s11 = scalar_lea.sflag [#allocation3], 1
    %12 = vsyncpa %s11, 0
    loop: start=0, step=1, limit=4
    $region2: #{tpu_custom_call.1} parent=1 // loop_pre_header
      _
    $region3: #{tpu_custom_call.1} parent=1 // loop_header
      %s14 = sphi 0, %s18
      %p15 = scmp.ge.s32.totalorder %s14, 4
      %s21 = sphi 0, %s33
      %s22 = sphi 0, %s29
      %s23 = sphi 0, %s21
      %s24 = sphi 0, %s22
      %s25 = sphi 0, %s23
      %s26 = sphi 0, %s24
      %s38 = sphi 0, %s40
      %s41 = sphi 0, %s38
      %s42 = sphi 0, %s41
      %s58 = sphi 0, %s42
      %s66 = sphi 0, %s68
      %s69 = sphi 0, %s66
      %s70 = sphi 0, %s69
      %s86 = sphi 0, %s70
      %s90 = sphi 0, %s90
      %s92 = sphi 0, %s90
      %s93 = sphi 0, %s92
      %s107 = sphi 0, %s93
      %s111 = sphi 0, %s111
      %s113 = sphi 0, %s111
      %s114 = sphi 0, %s113
      %s128 = sphi 0, %s114
      %s132 = sphi 0, %s132
      %s134 = sphi 0, %s132
      %s135 = sphi 0, %s134
      %s149 = sphi 0, %s135
      %s157 = sphi 0, %s159
      %s160 = sphi 0, %s157
      %s161 = sphi 0, %s160
      %s177 = sphi 0, %s161
    $region4: #{tpu_custom_call.1} parent=1 // loop_header_branch
      %17 = sbr.rel (%p15) target = $region8
    $region5: #{tpu_custom_call.1} parent=1 // loop_body
      %s19 = ssub.s32 %s14, 1
      %s20 = ssub.s32 %s14, 2
      %s27 = sadd.s32 1, %s22
      %p28 = scmp.ge.s32.totalorder %s27, 1
      %s29 = scalar_select %p28, 0, %s27
      %s30 = sadd.s32 1, %s21
      %s31 = scalar_select %p28, %s30, %s21
      %p32 = scmp.ge.s32.totalorder %s31, 2
      %s33 = scalar_select %p32, 0, %s31
      %s34 = ssub.s32 %s21, %s33
      %s35 = ssub.s32 %s22, %s29
      %s36 = sor.u32 %s34, %s35
      %p37 = scmp.eq.s32.totalorder %s36, 0
      %s39 = sadd.s32 %s38, 1
      %s40 = scalar_select %p37, %s38, %s39
      %p43 = pneg %p37
      %p44 = scmp.eq.s32.totalorder %s14, 1
      %p45 = por %p43, %p44
      %p46 = scmp.ne.s32.totalorder %s38, %s41
      %p47 = scmp.eq.s32.totalorder %s14, 0
      %p48 = por %p46, %p47
      %p49 = scmp.ne.s32.totalorder %s38, %s41
      %p50 = scmp.eq.s32.totalorder %s19, 1
      %p51 = por %p49, %p50
      %p52 = scmp.ne.s32.totalorder %s41, %s42
      %p53 = scmp.eq.s32.totalorder %s19, 0
      %p54 = por %p52, %p53
      %p55 = scmp.ne.s32.totalorder %s41, %s42
      %p56 = scmp.eq.s32.totalorder %s20, 1
      %p57 = por %p55, %p56
      %p59 = scmp.ne.s32.totalorder %s42, %s58
      %p60 = scmp.eq.s32.totalorder %s20, 0
      %p61 = por %p59, %p60
      %s62 = ssub.s32 %s21, %s33
      %s63 = ssub.s32 %s22, %s29
      %s64 = sor.u32 %s62, %s63
      %p65 = scmp.eq.s32.totalorder %s64, 0
      %s67 = sadd.s32 %s66, 1
      %s68 = scalar_select %p65, %s66, %s67
      %p71 = pneg %p65
      %p72 = scmp.eq.s32.totalorder %s14, 1
      %p73 = por %p71, %p72
      %p74 = scmp.ne.s32.totalorder %s66, %s69
      %p75 = scmp.eq.s32.totalorder %s14, 0
      %p76 = por %p74, %p75
      %p77 = scmp.ne.s32.totalorder %s66, %s69
      %p78 = scmp.eq.s32.totalorder %s19, 1
      %p79 = por %p77, %p78
      %p80 = scmp.ne.s32.totalorder %s69, %s70
      %p81 = scmp.eq.s32.totalorder %s19, 0
      %p82 = por %p80, %p81
      %p83 = scmp.ne.s32.totalorder %s69, %s70
      %p84 = scmp.eq.s32.totalorder %s20, 1
      %p85 = por %p83, %p84
      %p87 = scmp.ne.s32.totalorder %s70, %s86
      %p88 = scmp.eq.s32.totalorder %s20, 0
      %p89 = por %p87, %p88
      %s91 = sadd.s32 %s90, 1
      %p94 = scmp.eq.s32.totalorder %s14, 1
      %p95 = scmp.ne.s32.totalorder %s90, %s92
      %p96 = scmp.eq.s32.totalorder %s14, 0
      %p97 = por %p95, %p96
      %p98 = scmp.ne.s32.totalorder %s90, %s92
      %p99 = scmp.eq.s32.totalorder %s19, 1
      %p100 = por %p98, %p99
      %p101 = scmp.ne.s32.totalorder %s92, %s93
      %p102 = scmp.eq.s32.totalorder %s19, 0
      %p103 = por %p101, %p102
      %p104 = scmp.ne.s32.totalorder %s92, %s93
      %p105 = scmp.eq.s32.totalorder %s20, 1
      %p106 = por %p104, %p105
      %p108 = scmp.ne.s32.totalorder %s93, %s107
      %p109 = scmp.eq.s32.totalorder %s20, 0
      %p110 = por %p108, %p109
      %s112 = sadd.s32 %s111, 1
      %p115 = scmp.eq.s32.totalorder %s14, 1
      %p116 = scmp.ne.s32.totalorder %s111, %s113
      %p117 = scmp.eq.s32.totalorder %s14, 0
      %p118 = por %p116, %p117
      %p119 = scmp.ne.s32.totalorder %s111, %s113
      %p120 = scmp.eq.s32.totalorder %s19, 1
      %p121 = por %p119, %p120
      %p122 = scmp.ne.s32.totalorder %s113, %s114
      %p123 = scmp.eq.s32.totalorder %s19, 0
      %p124 = por %p122, %p123
      %p125 = scmp.ne.s32.totalorder %s113, %s114
      %p126 = scmp.eq.s32.totalorder %s20, 1
      %p127 = por %p125, %p126
      %p129 = scmp.ne.s32.totalorder %s114, %s128
      %p130 = scmp.eq.s32.totalorder %s20, 0
      %p131 = por %p129, %p130
      %s133 = sadd.s32 %s132, 1
      %p136 = scmp.eq.s32.totalorder %s14, 1
      %p137 = scmp.ne.s32.totalorder %s132, %s134
      %p138 = scmp.eq.s32.totalorder %s14, 0
      %p139 = por %p137, %p138
      %p140 = scmp.ne.s32.totalorder %s132, %s134
      %p141 = scmp.eq.s32.totalorder %s19, 1
      %p142 = por %p140, %p141
      %p143 = scmp.ne.s32.totalorder %s134, %s135
      %p144 = scmp.eq.s32.totalorder %s19, 0
      %p145 = por %p143, %p144
      %p146 = scmp.ne.s32.totalorder %s134, %s135
      %p147 = scmp.eq.s32.totalorder %s20, 1
      %p148 = por %p146, %p147
      %p150 = scmp.ne.s32.totalorder %s135, %s149
      %p151 = scmp.eq.s32.totalorder %s20, 0
      %p152 = por %p150, %p151
      %s153 = ssub.s32 %s21, %s33
      %s154 = ssub.s32 %s22, %s29
      %s155 = sor.u32 %s153, %s154
      %p156 = scmp.eq.s32.totalorder %s155, 0
      %s158 = sadd.s32 %s157, 1
      %s159 = scalar_select %p156, %s157, %s158
      %p162 = pneg %p156
      %p163 = scmp.eq.s32.totalorder %s14, 1
      %p164 = por %p162, %p163
      %p165 = scmp.ne.s32.totalorder %s157, %s160
      %p166 = scmp.eq.s32.totalorder %s14, 0
      %p167 = por %p165, %p166
      %p168 = scmp.ne.s32.totalorder %s157, %s160
      %p169 = scmp.eq.s32.totalorder %s19, 1
      %p170 = por %p168, %p169
      %p171 = scmp.ne.s32.totalorder %s160, %s161
      %p172 = scmp.eq.s32.totalorder %s19, 0
      %p173 = por %p171, %p172
      %p174 = scmp.ne.s32.totalorder %s160, %s161
      %p175 = scmp.eq.s32.totalorder %s20, 1
      %p176 = por %p174, %p175
      %p178 = scmp.ne.s32.totalorder %s161, %s177
      %p179 = scmp.eq.s32.totalorder %s20, 0
      %p180 = por %p178, %p179
      %p181 = scmp.le.s32.totalorder 1, %s14
      %p182 = scmp.lt.s32.totalorder %s14, 3
      %p183 = pnand %p181, %p182
      %p184 = pneg %p183
      // Predicated region
      $region9: #{tpu_custom_call.1} parent=5 // pred_check
        _
      $region10: #{tpu_custom_call.1} parent=5 // pred_check_branch
        %186 = sbr.rel (%p183) target = $region12
      $region11: #{tpu_custom_call.1} parent=5 // pred_region
        %s187 = ssub.s32 %s14, 1
        // Predicated region
        $region13: #{tpu_custom_call.1} parent=11 // pred_check
          %p188 = pneg %p103
        $region14: #{tpu_custom_call.1} parent=11 // pred_check_branch
          %190 = sbr.rel (%p188) target = $region16
        $region15: #{tpu_custom_call.1} parent=11 // pred_region
          _
        $region16: #{tpu_custom_call.1} parent=11 // pred_fallthru
          _
        // Predicated region
        $region17: #{tpu_custom_call.1} parent=11 // pred_check
          %p191 = pneg %p124
        $region18: #{tpu_custom_call.1} parent=11 // pred_check_branch
          %193 = sbr.rel (%p191) target = $region20
        $region19: #{tpu_custom_call.1} parent=11 // pred_region
          _
        $region20: #{tpu_custom_call.1} parent=11 // pred_fallthru
          _
        // Predicated region
        $region21: #{tpu_custom_call.1} parent=11 // pred_check
          %p194 = pneg %p145
        $region22: #{tpu_custom_call.1} parent=11 // pred_check_branch
          %196 = sbr.rel (%p194) target = $region24
        $region23: #{tpu_custom_call.1} parent=11 // pred_region
          _
        $region24: #{tpu_custom_call.1} parent=11 // pred_fallthru
          _
      $region12: #{tpu_custom_call.1} parent=5 // pred_fallthru
        _
      %p197 = scmp.lt.s32.totalorder %s14, 2
      // Predicated region
      $region25: #{tpu_custom_call.1} parent=5 // pred_check
        %p198 = pneg %p197
      $region26: #{tpu_custom_call.1} parent=5 // pred_check_branch
        %200 = sbr.rel (%p198) target = $region28
      $region27: #{tpu_custom_call.1} parent=5 // pred_region
        // Predicated region
        $region29: #{tpu_custom_call.1} parent=27 // pred_check
          %p201 = pneg %p48
        $region30: #{tpu_custom_call.1} parent=27 // pred_check_branch
          %203 = sbr.rel (%p201) target = $region32
        $region31: #{tpu_custom_call.1} parent=27 // pred_region
          %s204 = smul.u32 2, %s22
          %p205 = scmp.lt.s32.totalorder %s21, 1
          %s206 = scalar_select %p205, %s21, 1
          %p207 = scmp.lt.s32.totalorder %s204, 1
          %s208 = scalar_select %p207, %s204, 1
          %s209 = smul.addr %s206, 2
          %s210 = sadd.s32 %s208, %s209
          %s211 = smul.addr %s210, 4
          %s212 = scalar_lea.vmem %s0, %s211
          %s213 = smul.u32 2, %s22
        $region32: #{tpu_custom_call.1} parent=27 // pred_fallthru
          _
        // Predicated region
        $region33: #{tpu_custom_call.1} parent=27 // pred_check
          %p214 = pneg %p76
        $region34: #{tpu_custom_call.1} parent=27 // pred_check_branch
          %216 = sbr.rel (%p214) target = $region36
        $region35: #{tpu_custom_call.1} parent=27 // pred_region
          %s217 = smul.u32 2, %s22
          %p218 = scmp.lt.s32.totalorder %s21, 1
          %s219 = scalar_select %p218, %s21, 1
          %p220 = scmp.lt.s32.totalorder %s217, 1
          %s221 = scalar_select %p220, %s217, 1
          %s222 = smul.addr %s219, 8
          %s223 = sadd.s32 %s221, %s222
          %s224 = smul.addr %s223, 8
          %s225 = scalar_lea.vmem %s1, %s224
          %s226 = smul.u32 2, %s22
        $region36: #{tpu_custom_call.1} parent=27 // pred_fallthru
          _
      $region28: #{tpu_custom_call.1} parent=5 // pred_fallthru
        _
      %p227 = scmp.le.s32.totalorder 1, %s14
      %p228 = scmp.lt.s32.totalorder %s14, 3
      %p229 = pnand %p227, %p228
      %p230 = pneg %p229
      // Predicated region
      $region37: #{tpu_custom_call.1} parent=5 // pred_check
        _
      $region38: #{tpu_custom_call.1} parent=5 // pred_check_branch
        %232 = sbr.rel (%p229) target = $region40
      $region39: #{tpu_custom_call.1} parent=5 // pred_region
        %s233 = ssub.s32 %s14, 1
        %s234 = smul.u32 2, %s24
        %p235 = scmp.lt.s32.totalorder %s23, 1
        %s236 = scalar_select %p235, %s23, 1
        %p237 = scmp.lt.s32.totalorder %s234, 1
        %s238 = scalar_select %p237, %s234, 1
        %s239 = smul.addr %s236, 2
        %s240 = sadd.s32 %s238, %s239
        %s241 = smul.addr %s240, 4
        %s242 = scalar_lea.vmem %s0, %s241
        %p243 = pneg %p54
        %p244 = pneg %p51
        %s245 = smul.u32 2, %s24
        %p246 = scmp.lt.s32.totalorder %s23, 1
        %s247 = scalar_select %p246, %s23, 1
        %p248 = scmp.lt.s32.totalorder %s245, 1
        %s249 = scalar_select %p248, %s245, 1
        %s250 = smul.addr %s247, 8
        %s251 = sadd.s32 %s249, %s250
        %s252 = smul.addr %s251, 8
        %s253 = scalar_lea.vmem %s1, %s252
        %p254 = pneg %p82
        %p255 = pneg %p79
        %p256 = pneg %p103
        %p257 = pneg %p100
        %p258 = pneg %p124
        %p259 = pneg %p121
        %p260 = pneg %p145
        %p261 = pneg %p142
        %p262 = pneg %p173
        %p263 = pneg %p170
        %s264 = sand.u32 %s160, 1
        %s265 = scalar_lea.sflag [#allocation3], %s264
        %s266 = sand.u32 %s160, 1
        %s267 = smul.addr %s266, 64
        %s268 = scalar_lea.vmem [#allocation2], %s267
        %s269 = smul.u32 2, %s24
        %p270 = scmp.lt.s32.totalorder %s23, 1
        %s271 = scalar_select %p270, %s23, 1
        %p272 = scmp.lt.s32.totalorder %s269, 1
        %s273 = scalar_select %p272, %s269, 1
        %s274 = smul.addr %s271, 2
        %s275 = sadd.s32 %s273, %s274
        %s276 = smul.addr %s275, 4
        %s277 = scalar_lea.vmem %s0, %s276
        %s278 = smul.u32 2, %s24
        %s279 = smul.u32 2, %s24
        %p280 = scmp.lt.s32.totalorder %s23, 1
        %s281 = scalar_select %p280, %s23, 1
        %p282 = scmp.lt.s32.totalorder %s279, 1
        %s283 = scalar_select %p282, %s279, 1
        %s284 = smul.addr %s281, 8
        %s285 = sadd.s32 %s283, %s284
        %s286 = smul.addr %s285, 8
        %s287 = scalar_lea.vmem %s1, %s286
        %s288 = smul.u32 2, %s24
        %s289 = smul.u32 2, %s24
        %v290 = vld [vmem:[%s2] sm:$0xff]
        %v291 = vld [vmem:[%s2 + $0x8] sm:$0xff]
        %v292 = vld [vmem:[%s2 + $0x10] sm:$0xff]
        %v293 = vld [vmem:[%s2 + $0x18] sm:$0xff]
        %v294 = vld [vmem:[%s2 + $0x20] sm:$0xff]
        %v295 = vld [vmem:[%s2 + $0x28] sm:$0xff]
        %v296 = vld [vmem:[%s2 + $0x30] sm:$0xff]
        %v297 = vld [vmem:[%s2 + $0x38] sm:$0xff]
        %v298 = vld [vmem:[%s277] sm:$0xff]
        %v299 = vld [vmem:[%s3] sm:$0xff]
        %v300 = vld [vmem:[%s3 + $0x8] sm:$0xff]
        %v301 = vld [vmem:[%s3 + $0x10] sm:$0xff]
        %v302 = vld [vmem:[%s3 + $0x18] sm:$0xff]
        %v303 = vld [vmem:[%s3 + $0x20] sm:$0xff]
        %v304 = vld [vmem:[%s3 + $0x28] sm:$0xff]
        %v305 = vld [vmem:[%s3 + $0x30] sm:$0xff]
        %v306 = vld [vmem:[%s3 + $0x38] sm:$0xff]
        %308 = vset.pattern.permute.xlu0 0
        %309 = vperm.xlu0 %308, %v299
        %v310 = vpop.permute.xlu0 %309
        %313 = vset.pattern.permute.xlu0 0
        %314 = vperm.xlu0 %313, %v300
        %v315 = vpop.permute.xlu0 %314
        %318 = vset.pattern.permute.xlu0 0
        %319 = vperm.xlu0 %318, %v301
        %v320 = vpop.permute.xlu0 %319
        %323 = vset.pattern.permute.xlu0 0
        %324 = vperm.xlu0 %323, %v302
        %v325 = vpop.permute.xlu0 %324
        %328 = vset.pattern.permute.xlu0 0
        %329 = vperm.xlu0 %328, %v303
        %v330 = vpop.permute.xlu0 %329
        %333 = vset.pattern.permute.xlu0 0
        %334 = vperm.xlu0 %333, %v304
        %v335 = vpop.permute.xlu0 %334
        %338 = vset.pattern.permute.xlu0 0
        %339 = vperm.xlu0 %338, %v305
        %v340 = vpop.permute.xlu0 %339
        %343 = vset.pattern.permute.xlu0 0
        %344 = vperm.xlu0 %343, %v306
        %v345 = vpop.permute.xlu0 %344
        %v348 = vcombine.high %v298, %v298
        %vm349 = vcmask 31744
        %v351 = vsel %vm349, %v290, 0
        %v354 = vsel %vm349, %v291, 0
        %v357 = vsel %vm349, %v292, 0
        %v360 = vsel %vm349, %v293, 0
        %v363 = vsel %vm349, %v294, 0
        %v366 = vsel %vm349, %v295, 0
        %v369 = vsel %vm349, %v296, 0
        %v372 = vsel %vm349, %v297, 0
        %vm374 = vcmask 1043456
        %v375 = vsel %vm374, %v298, 0
        %v377 = vsel %vm374, %v348, 0
        %379 = vmatprep.subr.mxu0 %v377
        %380 = vmatpush1.msra.mxu0 %v375
        %381 = vmatprep.subr.mxu0 0.0
        %382 = vmatpush1.msra.mxu0 0.0
        %383 = vmatprep.subr.mxu0 0.0
        %384 = vmatpush1.msra.mxu0 0.0
        %385 = vmatprep.subr.mxu0 0.0
        %386 = vmatpush1.msra.mxu0 0.0
        %387 = vmatprep.subr.mxu0 0.0
        %388 = vmatpush1.msra.mxu0 0.0
        %389 = vmatprep.subr.mxu0 0.0
        %390 = vmatpush1.msra.mxu0 0.0
        %391 = vmatprep.subr.mxu0 0.0
        %392 = vmatpush1.msra.mxu0 0.0
        %393 = vmatprep.subr.mxu0 0.0
        %394 = vmatpush1.msra.mxu0 0.0
        %395 = vmatprep.subr.mxu0 0.0
        %396 = vmatpush1.msra.mxu0 0.0
        %397 = vmatprep.subr.mxu0 0.0
        %398 = vmatpush1.msra.mxu0 0.0
        %399 = vmatprep.subr.mxu0 0.0
        %400 = vmatpush1.msra.mxu0 0.0
        %401 = vmatprep.subr.mxu0 0.0
        %402 = vmatpush1.msra.mxu0 0.0
        %403 = vmatprep.subr.mxu0 0.0
        %404 = vmatpush1.msra.mxu0 0.0
        %405 = vmatprep.subr.mxu0 0.0
        %406 = vmatpush1.msra.mxu0 0.0
        %407 = vmatprep.subr.mxu0 0.0
        %408 = vmatpush1.msra.mxu0 0.0
        %409 = vmatprep.subr.mxu0 0.0
        %410 = vmatpush1.msra.mxu0 0.0
        %411 = vmatprep.subr.mxu0 0.0
        %412 = vmatpush1.msra.mxu0 0.0
        %413 = vmatprep.subr.mxu0 0.0
        %414 = vmatpush1.msra.mxu0 0.0
        %415 = vmatprep.subr.mxu0 0.0
        %416 = vmatpush1.msra.mxu0 0.0
        %417 = vmatprep.subr.mxu0 0.0
        %418 = vmatpush1.msra.mxu0 0.0
        %419 = vmatprep.subr.mxu0 0.0
        %420 = vmatpush1.msra.mxu0 0.0
        %421 = vmatprep.subr.mxu0 0.0
        %422 = vmatpush1.msra.mxu0 0.0
        %423 = vmatprep.subr.mxu0 0.0
        %424 = vmatpush1.msra.mxu0 0.0
        %425 = vmatprep.subr.mxu0 0.0
        %426 = vmatpush1.msra.mxu0 0.0
        %427 = vmatprep.subr.mxu0 0.0
        %428 = vmatpush1.msra.mxu0 0.0
        %429 = vmatprep.subr.mxu0 0.0
        %430 = vmatpush1.msra.mxu0 0.0
        %431 = vmatprep.subr.mxu0 0.0
        %432 = vmatpush1.msra.mxu0 0.0
        %433 = vmatprep.subr.mxu0 0.0
        %434 = vmatpush1.msra.mxu0 0.0
        %435 = vmatprep.subr.mxu0 0.0
        %436 = vmatpush1.msra.mxu0 0.0
        %437 = vmatprep.subr.mxu0 0.0
        %438 = vmatpush1.msra.mxu0 0.0
        %439 = vmatprep.subr.mxu0 0.0
        %440 = vmatpush1.msra.mxu0 0.0
        %441 = vmatprep.subr.mxu0 0.0
        %442 = vmatpush1.msra.mxu0 0.0
        %443 = vmatprep.mubr.f32.mxu0 0.0
        %444 = vmatmul.mubr.f32.gmra.mrb[0].mxu0 %v351
        %v445 = vpop.f32.mrb[0].mxu0
        %v446 = vadd.f32 %v310, %v445
        %v447 = vpop.f32.mrb[0].mxu0
        %v448 = vadd.f32 %v310, %v447
        %449 = vmatprep.mubr.f32.mxu0 0.0
        %450 = vmatmul.mubr.f32.gmra.mrb[0].mxu0 %v354
        %v451 = vpop.f32.mrb[0].mxu0
        %v452 = vadd.f32 %v315, %v451
        %v453 = vpop.f32.mrb[0].mxu0
        %v454 = vadd.f32 %v315, %v453
        %455 = vmatprep.mubr.f32.mxu0 0.0
        %456 = vmatmul.mubr.f32.gmra.mrb[0].mxu0 %v357
        %v457 = vpop.f32.mrb[0].mxu0
        %v458 = vadd.f32 %v320, %v457
        %v459 = vpop.f32.mrb[0].mxu0
        %v460 = vadd.f32 %v320, %v459
        %461 = vmatprep.mubr.f32.mxu0 0.0
        %462 = vmatmul.mubr.f32.gmra.mrb[0].mxu0 %v360
        %v463 = vpop.f32.mrb[0].mxu0
        %v464 = vadd.f32 %v325, %v463
        %v465 = vpop.f32.mrb[0].mxu0
        %v466 = vadd.f32 %v325, %v465
        %467 = vmatprep.mubr.f32.mxu0 0.0
        %468 = vmatmul.mubr.f32.gmra.mrb[0].mxu0 %v363
        %v469 = vpop.f32.mrb[0].mxu0
        %v470 = vadd.f32 %v330, %v469
        %v471 = vpop.f32.mrb[0].mxu0
        %v472 = vadd.f32 %v330, %v471
        %473 = vmatprep.mubr.f32.mxu0 0.0
        %474 = vmatmul.mubr.f32.gmra.mrb[0].mxu0 %v366
        %v475 = vpop.f32.mrb[0].mxu0
        %v476 = vadd.f32 %v335, %v475
        %v477 = vpop.f32.mrb[0].mxu0
        %v478 = vadd.f32 %v335, %v477
        %479 = vmatprep.mubr.f32.mxu0 0.0
        %480 = vmatmul.mubr.f32.gmra.mrb[0].mxu0 %v369
        %v481 = vpop.f32.mrb[0].mxu0
        %v482 = vadd.f32 %v340, %v481
        %v483 = vpop.f32.mrb[0].mxu0
        %v484 = vadd.f32 %v340, %v483
        %485 = vmatprep.mubr.f32.mxu0 0.0
        %486 = vmatmul.mubr.f32.gmra.mrb[0].mxu0 %v372
        %v487 = vpop.f32.mrb[0].mxu0
        %v488 = vadd.f32 %v345, %v487
        %v489 = vpop.f32.mrb[0].mxu0
        %v490 = vadd.f32 %v345, %v489
        %491 = vdwg.mxu0
        %v492 = vld [vmem:[%s4] sm:$0xff]
        %v493 = vld [vmem:[%s4 + $0x8] sm:$0xff]
        %v494 = vld [vmem:[%s4 + $0x10] sm:$0xff]
        %v495 = vld [vmem:[%s4 + $0x18] sm:$0xff]
        %v496 = vld [vmem:[%s4 + $0x20] sm:$0xff]
        %v497 = vld [vmem:[%s4 + $0x28] sm:$0xff]
        %v498 = vld [vmem:[%s4 + $0x30] sm:$0xff]
        %v499 = vld [vmem:[%s4 + $0x38] sm:$0xff]
        %v500 = vld [vmem:[%s287] sm:$0xff]
        %v501 = vld [vmem:[%s287 + $0x8] sm:$0xff]
        %v502 = vld [vmem:[%s287 + $0x10] sm:$0xff]
        %v503 = vld [vmem:[%s287 + $0x18] sm:$0xff]
        %v504 = vld [vmem:[%s287 + $0x20] sm:$0xff]
        %v505 = vld [vmem:[%s287 + $0x28] sm:$0xff]
        %v506 = vld [vmem:[%s287 + $0x30] sm:$0xff]
        %v507 = vld [vmem:[%s287 + $0x38] sm:$0xff]
        %vm508 = vcmask 261120
        %v510 = vsel %vm508, %v492, 0
        %v513 = vsel %vm508, %v493, 0
        %v516 = vsel %vm508, %v494, 0
        %v519 = vsel %vm508, %v495, 0
        %v522 = vsel %vm508, %v496, 0
        %v525 = vsel %vm508, %v497, 0
        %v528 = vsel %vm508, %v498, 0
        %v531 = vsel %vm508, %v499, 0
        %533 = vmatprep.subr.mxu0 %v501
        %534 = vmatpush1.msra.mxu0 %v500
        %535 = vmatprep.subr.mxu0 %v503
        %536 = vmatpush1.msra.mxu0 %v502
        %537 = vmatprep.subr.mxu0 %v505
        %538 = vmatpush1.msra.mxu0 %v504
        %539 = vmatprep.subr.mxu0 %v507
        %540 = vmatpush1.msra.mxu0 %v506
        %541 = vmatprep.subr.mxu0 0.0
        %542 = vmatpush1.msra.mxu0 0.0
        %543 = vmatprep.subr.mxu0 0.0
        %544 = vmatpush1.msra.mxu0 0.0
        %545 = vmatprep.subr.mxu0 0.0
        %546 = vmatpush1.msra.mxu0 0.0
        %547 = vmatprep.subr.mxu0 0.0
        %548 = vmatpush1.msra.mxu0 0.0
        %549 = vmatprep.subr.mxu0 0.0
        %550 = vmatpush1.msra.mxu0 0.0
        %551 = vmatprep.subr.mxu0 0.0
        %552 = vmatpush1.msra.mxu0 0.0
        %553 = vmatprep.subr.mxu0 0.0
        %554 = vmatpush1.msra.mxu0 0.0
        %555 = vmatprep.subr.mxu0 0.0
        %556 = vmatpush1.msra.mxu0 0.0
        %557 = vmatprep.subr.mxu0 0.0
        %558 = vmatpush1.msra.mxu0 0.0
        %559 = vmatprep.subr.mxu0 0.0
        %560 = vmatpush1.msra.mxu0 0.0
        %561 = vmatprep.subr.mxu0 0.0
        %562 = vmatpush1.msra.mxu0 0.0
        %563 = vmatprep.subr.mxu0 0.0
        %564 = vmatpush1.msra.mxu0 0.0
        %565 = vmatprep.subr.mxu0 0.0
        %566 = vmatpush1.msra.mxu0 0.0
        %567 = vmatprep.subr.mxu0 0.0
        %568 = vmatpush1.msra.mxu0 0.0
        %569 = vmatprep.subr.mxu0 0.0
        %570 = vmatpush1.msra.mxu0 0.0
        %571 = vmatprep.subr.mxu0 0.0
        %572 = vmatpush1.msra.mxu0 0.0
        %573 = vmatprep.subr.mxu0 0.0
        %574 = vmatpush1.msra.mxu0 0.0
        %575 = vmatprep.subr.mxu0 0.0
        %576 = vmatpush1.msra.mxu0 0.0
        %577 = vmatprep.subr.mxu0 0.0
        %578 = vmatpush1.msra.mxu0 0.0
        %579 = vmatprep.subr.mxu0 0.0
        %580 = vmatpush1.msra.mxu0 0.0
        %581 = vmatprep.subr.mxu0 0.0
        %582 = vmatpush1.msra.mxu0 0.0
        %583 = vmatprep.subr.mxu0 0.0
        %584 = vmatpush1.msra.mxu0 0.0
        %585 = vmatprep.subr.mxu0 0.0
        %586 = vmatpush1.msra.mxu0 0.0
        %587 = vmatprep.subr.mxu0 0.0
        %588 = vmatpush1.msra.mxu0 0.0
        %589 = vmatprep.subr.mxu0 0.0
        %590 = vmatpush1.msra.mxu0 0.0
        %591 = vmatprep.subr.mxu0 0.0
        %592 = vmatpush1.msra.mxu0 0.0
        %593 = vmatprep.subr.mxu0 0.0
        %594 = vmatpush1.msra.mxu0 0.0
        %595 = vmatprep.subr.mxu0 0.0
        %596 = vmatpush1.msra.mxu0 0.0
        %597 = vmatprep.mubr.f32.mxu0 0.0
        %598 = vmatmul.mubr.f32.gmra.mrb[0].mxu0 %v510
        %v599 = vpop.f32.mrb[0].mxu0
        %v600 = vadd.f32 0.0, %v599
        %v601 = vpop.f32.mrb[0].mxu0
        %v602 = vadd.f32 0.0, %v601
        %603 = vmatprep.mubr.f32.mxu0 0.0
        %604 = vmatmul.mubr.f32.gmra.mrb[0].mxu0 %v513
        %v605 = vpop.f32.mrb[0].mxu0
        %v606 = vadd.f32 0.0, %v605
        %v607 = vpop.f32.mrb[0].mxu0
        %v608 = vadd.f32 0.0, %v607
        %609 = vmatprep.mubr.f32.mxu0 0.0
        %610 = vmatmul.mubr.f32.gmra.mrb[0].mxu0 %v516
        %v611 = vpop.f32.mrb[0].mxu0
        %v612 = vadd.f32 0.0, %v611
        %v613 = vpop.f32.mrb[0].mxu0
        %v614 = vadd.f32 0.0, %v613
        %615 = vmatprep.mubr.f32.mxu0 0.0
        %616 = vmatmul.mubr.f32.gmra.mrb[0].mxu0 %v519
        %v617 = vpop.f32.mrb[0].mxu0
        %v618 = vadd.f32 0.0, %v617
        %v619 = vpop.f32.mrb[0].mxu0
        %v620 = vadd.f32 0.0, %v619
        %621 = vmatprep.mubr.f32.mxu0 0.0
        %622 = vmatmul.mubr.f32.gmra.mrb[0].mxu0 %v522
        %v623 = vpop.f32.mrb[0].mxu0
        %v624 = vadd.f32 0.0, %v623
        %v625 = vpop.f32.mrb[0].mxu0
        %v626 = vadd.f32 0.0, %v625
        %627 = vmatprep.mubr.f32.mxu0 0.0
        %628 = vmatmul.mubr.f32.gmra.mrb[0].mxu0 %v525
        %v629 = vpop.f32.mrb[0].mxu0
        %v630 = vadd.f32 0.0, %v629
        %v631 = vpop.f32.mrb[0].mxu0
        %v632 = vadd.f32 0.0, %v631
        %633 = vmatprep.mubr.f32.mxu0 0.0
        %634 = vmatmul.mubr.f32.gmra.mrb[0].mxu0 %v528
        %v635 = vpop.f32.mrb[0].mxu0
        %v636 = vadd.f32 0.0, %v635
        %v637 = vpop.f32.mrb[0].mxu0
        %v638 = vadd.f32 0.0, %v637
        %639 = vmatprep.mubr.f32.mxu0 0.0
        %640 = vmatmul.mubr.f32.gmra.mrb[0].mxu0 %v531
        %v641 = vpop.f32.mrb[0].mxu0
        %v642 = vadd.f32 0.0, %v641
        %v643 = vpop.f32.mrb[0].mxu0
        %v644 = vadd.f32 0.0, %v643
        %645 = vdwg.mxu0
        %v646 = vadd.f32 %v446, %v600
        %v647 = vadd.f32 %v448, %v602
        %v648 = vadd.f32 %v452, %v606
        %v649 = vadd.f32 %v454, %v608
        %v650 = vadd.f32 %v458, %v612
        %v651 = vadd.f32 %v460, %v614
        %v652 = vadd.f32 %v464, %v618
        %v653 = vadd.f32 %v466, %v620
        %v654 = vxor.u32 %v646, 2147483648
        %v655 = vxor.u32 %v647, 2147483648
        %v656 = vxor.u32 %v648, 2147483648
        %v657 = vxor.u32 %v649, 2147483648
        %v658 = vxor.u32 %v650, 2147483648
        %v659 = vxor.u32 %v651, 2147483648
        %v660 = vxor.u32 %v652, 2147483648
        %v661 = vxor.u32 %v653, 2147483648
        %v662 = vmul.f32 %v654, 1.442695
        %v663 = vpow.pop %v662
        %v664 = vmul.f32 %v655, 1.442695
        %v665 = vpow.pop %v664
        %v666 = vmul.f32 %v656, 1.442695
        %v667 = vpow.pop %v666
        %v668 = vmul.f32 %v657, 1.442695
        %v669 = vpow.pop %v668
        %v670 = vmul.f32 %v658, 1.442695
        %v671 = vpow.pop %v670
        %v672 = vmul.f32 %v659, 1.442695
        %v673 = vpow.pop %v672
        %v674 = vmul.f32 %v660, 1.442695
        %v675 = vpow.pop %v674
        %v676 = vmul.f32 %v661, 1.442695
        %v677 = vpow.pop %v676
        %v678 = vadd.f32 %v663, 1.0
        %v679 = vadd.f32 %v665, 1.0
        %v680 = vadd.f32 %v667, 1.0
        %v681 = vadd.f32 %v669, 1.0
        %v682 = vadd.f32 %v671, 1.0
        %v683 = vadd.f32 %v673, 1.0
        %v684 = vadd.f32 %v675, 1.0
        %v685 = vadd.f32 %v677, 1.0
        %v686 = vrcp.pop %v678
        %v687 = vmul.f32 1.0, %v686
        %v688 = vrcp.pop %v679
        %v689 = vmul.f32 1.0, %v688
        %v690 = vrcp.pop %v680
        %v691 = vmul.f32 1.0, %v690
        %v692 = vrcp.pop %v681
        %v693 = vmul.f32 1.0, %v692
        %v694 = vrcp.pop %v682
        %v695 = vmul.f32 1.0, %v694
        %v696 = vrcp.pop %v683
        %v697 = vmul.f32 1.0, %v696
        %v698 = vrcp.pop %v684
        %v699 = vmul.f32 1.0, %v698
        %v700 = vrcp.pop %v685
        %v701 = vmul.f32 1.0, %v700
        %v702 = vmul.f32 %v687, %v624
        %v703 = vmul.f32 %v689, %v626
        %v704 = vmul.f32 %v691, %v630
        %v705 = vmul.f32 %v693, %v632
        %v706 = vmul.f32 %v695, %v636
        %v707 = vmul.f32 %v697, %v638
        %v708 = vmul.f32 %v699, %v642
        %v709 = vmul.f32 %v701, %v644
        %v710 = vadd.f32 %v702, %v470
        %v711 = vadd.f32 %v703, %v472
        %v712 = vadd.f32 %v704, %v476
        %v713 = vadd.f32 %v705, %v478
        %v714 = vadd.f32 %v706, %v482
        %v715 = vadd.f32 %v707, %v484
        %v716 = vadd.f32 %v708, %v488
        %v717 = vadd.f32 %v709, %v490
        %v718 = vtanh.pop %v710
        %v719 = vtanh.pop %v711
        %v720 = vtanh.pop %v712
        %v721 = vtanh.pop %v713
        %v722 = vtanh.pop %v714
        %v723 = vtanh.pop %v715
        %v724 = vtanh.pop %v716
        %v725 = vtanh.pop %v717
        %v726 = vsub.f32 %v500, %v718
        %v727 = vsub.f32 %v501, %v719
        %v728 = vsub.f32 %v502, %v720
        %v729 = vsub.f32 %v503, %v721
        %v730 = vsub.f32 %v504, %v722
        %v731 = vsub.f32 %v505, %v723
        %v732 = vsub.f32 %v506, %v724
        %v733 = vsub.f32 %v507, %v725
        %v734 = vmul.f32 %v687, %v726
        %v735 = vmul.f32 %v689, %v727
        %v736 = vmul.f32 %v691, %v728
        %v737 = vmul.f32 %v693, %v729
        %v738 = vmul.f32 %v695, %v730
        %v739 = vmul.f32 %v697, %v731
        %v740 = vmul.f32 %v699, %v732
        %v741 = vmul.f32 %v701, %v733
        %v742 = vadd.f32 %v718, %v734
        %v743 = vadd.f32 %v719, %v735
        %v744 = vadd.f32 %v720, %v736
        %v745 = vadd.f32 %v721, %v737
        %v746 = vadd.f32 %v722, %v738
        %v747 = vadd.f32 %v723, %v739
        %v748 = vadd.f32 %v724, %v740
        %v749 = vadd.f32 %v725, %v741
        %750 = vst [vmem:[%s268] sm:$0xff] %v742
        %751 = vst [vmem:[%s268 + $0x8] sm:$0xff] %v743
        %752 = vst [vmem:[%s268 + $0x10] sm:$0xff] %v744
        %753 = vst [vmem:[%s268 + $0x18] sm:$0xff] %v745
        %754 = vst [vmem:[%s268 + $0x20] sm:$0xff] %v746
        %755 = vst [vmem:[%s268 + $0x28] sm:$0xff] %v747
        %756 = vst [vmem:[%s268 + $0x30] sm:$0xff] %v748
        %757 = vst [vmem:[%s268 + $0x38] sm:$0xff] %v749
        %s758 = sand.u32 %s160, 1
        %s759 = scalar_lea.sflag [#allocation3], %s758
        %s760 = sand.u32 %s160, 1
        %s761 = smul.addr %s760, 64
        %s762 = scalar_lea.vmem [#allocation2], %s761
        // Predicated region
        $region41: #{tpu_custom_call.1} parent=39 // pred_check
          %p763 = pneg %p170
        $region42: #{tpu_custom_call.1} parent=39 // pred_check_branch
          %765 = sbr.rel (%p763) target = $region44
        $region43: #{tpu_custom_call.1} parent=39 // pred_region
          %s766 = smul.u32 2, %s24
          %s768 = ssub.s32 1024, 1024
          %769 = vsyncadd %s759, %s768
          %s770 = smul.addr %s23, 8
          %s771 = sadd.s32 %s766, %s770
          %s772 = smul.addr %s771, 128
          %s773 = scalar_lea.hbm %s5, %s772
          %s774 = sshll.u32 %s762, 4
          %s775 = int_to_ptr.vmem [resolvable:$true] %s774
          %780 = dma.vmem_to_hbm [thread:$0]  %s775, 1024, %s773, %s759, 256, 256, 16
        $region44: #{tpu_custom_call.1} parent=39 // pred_fallthru
          _
      $region40: #{tpu_custom_call.1} parent=5 // pred_fallthru
        _
      %p781 = scmp.le.s32.totalorder 2, %s14
      // Predicated region
      $region45: #{tpu_custom_call.1} parent=5 // pred_check
        %p782 = pneg %p781
      $region46: #{tpu_custom_call.1} parent=5 // pred_check_branch
        %784 = sbr.rel (%p782) target = $region48
      $region47: #{tpu_custom_call.1} parent=5 // pred_region
        %s785 = ssub.s32 %s14, 2
        // Predicated region
        $region49: #{tpu_custom_call.1} parent=47 // pred_check
          %p786 = pneg %p176
        $region50: #{tpu_custom_call.1} parent=47 // pred_check_branch
          %788 = sbr.rel (%p786) target = $region52
        $region51: #{tpu_custom_call.1} parent=47 // pred_region
          %s789 = sand.u32 %s161, 1
          %s790 = scalar_lea.sflag [#allocation3], %s789
          %s791 = sand.u32 %s161, 1
          %s792 = smul.addr %s791, 64
          %s793 = scalar_lea.vmem [#allocation2], %s792
          %794 = dma.done %s790, 1024
        $region52: #{tpu_custom_call.1} parent=47 // pred_fallthru
          _
      $region48: #{tpu_custom_call.1} parent=5 // pred_fallthru
        _
    $region6: #{tpu_custom_call.1} parent=1 // loop_footer
      %s18 = sadd.s32 1, %s14
    $region7: #{tpu_custom_call.1} parent=1 // loop_footer_branch
      %13 = sbr.rel target = $region3
    $region8: #{tpu_custom_call.1} parent=1 // loop_exit
      _
    %795 = vsyncpa [#allocation3], 1
    %s796 = scalar_lea.sflag [#allocation3], 1
    %797 = vsyncpa %s796, 1

</llo_original>
